<compile_context>
chip_gen: v7x
topology: tpu7x:2x2x1
jax: 0.10.0
libtpu: 0.0.40
codegen_flags: <defaults>
</compile_context>

<pallas_src>
import functools

import jax
import jax.numpy as jnp
from jax import lax
from jax.experimental import pallas as pl
from jax.experimental.pallas import tpu as pltpu


def _l1_loss_kernel(ind_ref, feat_ref, tgt_ref, mask_ref, out_ref, pred_ref,
                    *, bb, num_k):
    """One grid step == `bb` batch elements.

    ind_ref  : SMEM (B, K) int32        scalar-prefetched gather indices
    feat_ref : VMEM (bb, C, HW)         streamed contiguous feature slab (native dtype)
    tgt_ref  : VMEM (bb, C, K) f32      targets, already transposed to (C, K)
    mask_ref : VMEM (bb, 1, K) f32      per-object mask
    out_ref  : VMEM (1, 128) f32        lane-dense per-step partial sum
    pred_ref : VMEM (C, K) f32 scratch  gathered prediction columns (K on lanes)
    """
    step = pl.program_id(0)
    hw = feat_ref.shape[-1]
    lane_ids = lax.broadcasted_iota(jnp.int32, (1, hw), 1)   # (1, HW) lane index

    partial = jnp.zeros((), jnp.float32)
    for i in range(bb):                                      # static: unrolled
        feat = feat_ref[i].astype(jnp.float32)               # (C, HW), cast in VMEM
        tgt = tgt_ref[i]                                      # (C, K)
        msk = mask_ref[i]                                     # (1, K)
        b = step * bb + i
        # Statically unrolled gather: one select + lane-reduce per object.
        for k in range(num_k):
            idx = ind_ref[b, k]                               # SMEM scalar
            col = jnp.sum(jnp.where(lane_ids == idx, feat, 0.0),
                          axis=1, keepdims=True)              # (C, 1) == feat[:, idx]
            pred_ref[:, k:k + 1] = col
        pred = pred_ref[...]                                  # (C, K), lane-dense
        # Exactly the module's math: |pred*mask - target*mask|.
        partial = partial + jnp.sum(jnp.abs(pred * msk - tgt * msk))

    out_ref[...] = jnp.full(out_ref.shape, partial, dtype=out_ref.dtype)


def l1_loss(output, mask, ind, target, *, batch_block=2):
    """output: (B, C, H, W), mask: (B, K), ind: (B, K) int, target: (B, K, C)."""
    B, C, H, W = output.shape
    K = ind.shape[1]
    HW = H * W

    # Amortize per-step overhead: bb batches per grid step (fallback to 1 if B
    # is not divisible so no out-of-range blocks are ever generated).
    bb = batch_block if (batch_block > 0 and B % batch_block == 0) else 1
    steps = B // bb

    # Free reshape only; feat keeps its native dtype (cast happens in-kernel).
    feat = output.reshape(B, C, HW)
    # Tiny per-object tensors, pre-laid-out lane-dense to match the (C, K) preds.
    tgt_r = jnp.transpose(target.astype(jnp.float32), (0, 2, 1))   # (B, C, K)
    mask_r = mask.astype(jnp.float32).reshape(B, 1, K)             # (B, 1, K)
    ind32 = ind.astype(jnp.int32)                                  # SMEM prefetch

    kernel = functools.partial(_l1_loss_kernel, bb=bb, num_k=K)

    grid_spec = pltpu.PrefetchScalarGridSpec(
        num_scalar_prefetch=1,                 # ind -> SMEM
        grid=(steps,),
        in_specs=[
            # Contiguous slab per step, auto double-buffered / pipelined.
            pl.BlockSpec((bb, C, HW), lambda s, ind_sref: (s, 0, 0)),
            pl.BlockSpec((bb, C, K), lambda s, ind_sref: (s, 0, 0)),
            pl.BlockSpec((bb, 1, K), lambda s, ind_sref: (s, 0, 0)),
        ],
        out_specs=pl.BlockSpec((None, 1, 128), lambda s, ind_sref: (s, 0, 0)),
        scratch_shapes=[pltpu.VMEM((C, K), jnp.float32)],          # gathered preds
    )

    partials = pl.pallas_call(
        kernel,
        out_shape=jax.ShapeDtypeStruct((steps, 1, 128), jnp.float32),
        grid_spec=grid_spec,
        compiler_params=pltpu.CompilerParams(
            dimension_semantics=("parallel",),       # real 2x only on v7x (2 TCs)
            vmem_limit_bytes=64 * 1024 * 1024,       # headroom for large C*HW slabs
        ),
    )(ind32, feat, tgt_r, mask_r)

    # Mean over B*K*C elements == F.l1_loss(pred*mask, target*mask, 'elementwise_mean').
    return jnp.sum(partials[:, 0, 0]) / float(B * K * C)


def l1_loss_ref(output, mask, ind, target):
    """Pure-JAX reference mirroring the PyTorch module."""
    B, C, H, W = output.shape
    K = ind.shape[1]
    feat = jnp.transpose(output, (0, 2, 3, 1)).reshape(B, H * W, C)
    idx = jnp.broadcast_to(ind.astype(jnp.int32)[:, :, None], (B, K, C))
    pred = jnp.take_along_axis(feat, idx, axis=1)
    m = mask.astype(jnp.float32)[:, :, None]
    return jnp.mean(jnp.abs(pred * m - target.astype(jnp.float32) * m))


if __name__ == "__main__":
    key = jax.random.PRNGKey(0)
    B, C, H, W, K = 4, 4, 16, 16, 8          # bb=2 -> grid=(2,), 2 batches/step
    k1, k2, k3, k4 = jax.random.split(key, 4)

    output = jax.random.normal(k1, (B, C, H, W), dtype=jnp.float32)
    target = jax.random.normal(k2, (B, K, C), dtype=jnp.float32)
    ind = jax.random.randint(k3, (B, K), 0, H * W, dtype=jnp.int32)
    mask = (jax.random.uniform(k4, (B, K)) > 0.3).astype(jnp.float32)

    loss = jax.block_until_ready(jax.jit(l1_loss)(output, mask, ind, target))
    ref = l1_loss_ref(output, mask, ind, target)
    assert jnp.allclose(loss, ref, atol=1e-5, rtol=1e-5), (loss, ref)
    print("KERNEL_OK")
</pallas_src>

<mosaic_0001>
module attributes {stable_mosaic.version = 11 : i64} {
  func.func @_l1_loss_kernel(%arg0: i32, %arg1: memref<4x8xi32, #tpu.memory_space<smem>>, %arg2: memref<2x4x256xf32, #tpu.memory_space<vmem>>, %arg3: memref<2x4x8xf32, #tpu.memory_space<vmem>>, %arg4: memref<2x1x8xf32, #tpu.memory_space<vmem>>, %arg5: memref<1x1x128xf32, #tpu.memory_space<vmem>>, %arg6: memref<4x8xf32, #tpu.memory_space<vmem>>) attributes {dimension_semantics = [#tpu.dimension_semantics<parallel>], iteration_bounds = array<i64: 2>, scalar_prefetch = 1 : i64, scratch_operands = 1 : i64, tpu.core_type = #tpu.core_type<tc>, window_params = [{transform_indices = @transform_0, window_bounds = array<i64: 2, 4, 256>}, {transform_indices = @transform_1, window_bounds = array<i64: 2, 4, 8>}, {transform_indices = @transform_2, window_bounds = array<i64: 2, 1, 8>}, {transform_indices = @transform_3, window_bounds = array<i64: 1, 1, 128>}]} {
    %0 = tpu.iota {dimensions = array<i32: 1>} : vector<1x256xi32>
    %c0 = arith.constant 0 : index
    %c0_0 = arith.constant 0 : index
    %c0_1 = arith.constant 0 : index
    %1 = vector.load %arg2[%c0, %c0_0, %c0_1] : memref<2x4x256xf32, #tpu.memory_space<vmem>>, vector<1x4x256xf32>
    %2 = vector.shape_cast %1 : vector<1x4x256xf32> to vector<4x256xf32>
    %c0_2 = arith.constant 0 : index
    %c0_3 = arith.constant 0 : index
    %c0_4 = arith.constant 0 : index
    %3 = vector.load %arg3[%c0_2, %c0_3, %c0_4] : memref<2x4x8xf32, #tpu.memory_space<vmem>>, vector<1x4x8xf32>
    %4 = vector.shape_cast %3 : vector<1x4x8xf32> to vector<4x8xf32>
    %c0_5 = arith.constant 0 : index
    %c0_6 = arith.constant 0 : index
    %c0_7 = arith.constant 0 : index
    %5 = vector.load %arg4[%c0_5, %c0_6, %c0_7] : memref<2x1x8xf32, #tpu.memory_space<vmem>>, vector<1x1x8xf32>
    %6 = vector.shape_cast %5 : vector<1x1x8xf32> to vector<1x8xf32>
    %c2_i32 = arith.constant 2 : i32
    %7 = arith.muli %arg0, %c2_i32 : i32
    %c0_i32 = arith.constant 0 : i32
    %8 = arith.addi %7, %c0_i32 : i32
    %9 = arith.index_cast %8 : i32 to index
    %c0_8 = arith.constant 0 : index
    %10 = memref.load %arg1[%9, %c0_8] : memref<4x8xi32, #tpu.memory_space<smem>>
    %11 = vector.broadcast %10 : i32 to vector<1x256xi32>
    %12 = arith.cmpi eq, %0, %11 : vector<1x256xi32>
    %cst = arith.constant 0.000000e+00 : f32
    %13 = vector.shape_cast %12 : vector<1x256xi1> to vector<1x256xi1>
    %14 = vector.broadcast %13 : vector<1x256xi1> to vector<4x256xi1>
    %15 = vector.broadcast %cst : f32 to vector<4x256xf32>
    %16 = arith.select %14, %2, %15 : vector<4x256xi1>, vector<4x256xf32>
    %cst_9 = arith.constant dense<0.000000e+00> : vector<4xf32>
    %17 = vector.multi_reduction <add>, %16, %cst_9 [1] : vector<4x256xf32> to vector<4xf32>
    %18 = vector.shape_cast %17 : vector<4xf32> to vector<4x1xf32>
    %c0_10 = arith.constant 0 : index
    %c0_11 = arith.constant 0 : index
    %19 = vector.load %arg6[%c0_10, %c0_11] : memref<4x8xf32, #tpu.memory_space<vmem>>, vector<4x1xf32>
    tpu.vector_store %arg6[%c0_10, %c0_11], %18 {strides = array<i32>} : memref<4x8xf32, #tpu.memory_space<vmem>>, vector<4x1xf32>,
    %20 = arith.index_cast %8 : i32 to index
    %c1 = arith.constant 1 : index
    %21 = memref.load %arg1[%20, %c1] : memref<4x8xi32, #tpu.memory_space<smem>>
    %22 = vector.broadcast %21 : i32 to vector<1x256xi32>
    %23 = arith.cmpi eq, %0, %22 : vector<1x256xi32>
    %cst_12 = arith.constant 0.000000e+00 : f32
    %24 = vector.shape_cast %23 : vector<1x256xi1> to vector<1x256xi1>
    %25 = vector.broadcast %24 : vector<1x256xi1> to vector<4x256xi1>
    %26 = vector.broadcast %cst_12 : f32 to vector<4x256xf32>
    %27 = arith.select %25, %2, %26 : vector<4x256xi1>, vector<4x256xf32>
    %cst_13 = arith.constant dense<0.000000e+00> : vector<4xf32>
    %28 = vector.multi_reduction <add>, %27, %cst_13 [1] : vector<4x256xf32> to vector<4xf32>
    %29 = vector.shape_cast %28 : vector<4xf32> to vector<4x1xf32>
    %c0_14 = arith.constant 0 : index
    %c1_15 = arith.constant 1 : index
    %30 = vector.load %arg6[%c0_14, %c1_15] : memref<4x8xf32, #tpu.memory_space<vmem>>, vector<4x1xf32>
    tpu.vector_store %arg6[%c0_14, %c1_15], %29 {strides = array<i32>} : memref<4x8xf32, #tpu.memory_space<vmem>>, vector<4x1xf32>,
    %31 = arith.index_cast %8 : i32 to index
    %c2 = arith.constant 2 : index
    %32 = memref.load %arg1[%31, %c2] : memref<4x8xi32, #tpu.memory_space<smem>>
    %33 = vector.broadcast %32 : i32 to vector<1x256xi32>
    %34 = arith.cmpi eq, %0, %33 : vector<1x256xi32>
    %cst_16 = arith.constant 0.000000e+00 : f32
    %35 = vector.shape_cast %34 : vector<1x256xi1> to vector<1x256xi1>
    %36 = vector.broadcast %35 : vector<1x256xi1> to vector<4x256xi1>
    %37 = vector.broadcast %cst_16 : f32 to vector<4x256xf32>
    %38 = arith.select %36, %2, %37 : vector<4x256xi1>, vector<4x256xf32>
    %cst_17 = arith.constant dense<0.000000e+00> : vector<4xf32>
    %39 = vector.multi_reduction <add>, %38, %cst_17 [1] : vector<4x256xf32> to vector<4xf32>
    %40 = vector.shape_cast %39 : vector<4xf32> to vector<4x1xf32>
    %c0_18 = arith.constant 0 : index
    %c2_19 = arith.constant 2 : index
    %41 = vector.load %arg6[%c0_18, %c2_19] : memref<4x8xf32, #tpu.memory_space<vmem>>, vector<4x1xf32>
    tpu.vector_store %arg6[%c0_18, %c2_19], %40 {strides = array<i32>} : memref<4x8xf32, #tpu.memory_space<vmem>>, vector<4x1xf32>,
    %42 = arith.index_cast %8 : i32 to index
    %c3 = arith.constant 3 : index
    %43 = memref.load %arg1[%42, %c3] : memref<4x8xi32, #tpu.memory_space<smem>>
    %44 = vector.broadcast %43 : i32 to vector<1x256xi32>
    %45 = arith.cmpi eq, %0, %44 : vector<1x256xi32>
    %cst_20 = arith.constant 0.000000e+00 : f32
    %46 = vector.shape_cast %45 : vector<1x256xi1> to vector<1x256xi1>
    %47 = vector.broadcast %46 : vector<1x256xi1> to vector<4x256xi1>
    %48 = vector.broadcast %cst_20 : f32 to vector<4x256xf32>
    %49 = arith.select %47, %2, %48 : vector<4x256xi1>, vector<4x256xf32>
    %cst_21 = arith.constant dense<0.000000e+00> : vector<4xf32>
    %50 = vector.multi_reduction <add>, %49, %cst_21 [1] : vector<4x256xf32> to vector<4xf32>
    %51 = vector.shape_cast %50 : vector<4xf32> to vector<4x1xf32>
    %c0_22 = arith.constant 0 : index
    %c3_23 = arith.constant 3 : index
    %52 = vector.load %arg6[%c0_22, %c3_23] : memref<4x8xf32, #tpu.memory_space<vmem>>, vector<4x1xf32>
    tpu.vector_store %arg6[%c0_22, %c3_23], %51 {strides = array<i32>} : memref<4x8xf32, #tpu.memory_space<vmem>>, vector<4x1xf32>,
    %53 = arith.index_cast %8 : i32 to index
    %c4 = arith.constant 4 : index
    %54 = memref.load %arg1[%53, %c4] : memref<4x8xi32, #tpu.memory_space<smem>>
    %55 = vector.broadcast %54 : i32 to vector<1x256xi32>
    %56 = arith.cmpi eq, %0, %55 : vector<1x256xi32>
    %cst_24 = arith.constant 0.000000e+00 : f32
    %57 = vector.shape_cast %56 : vector<1x256xi1> to vector<1x256xi1>
    %58 = vector.broadcast %57 : vector<1x256xi1> to vector<4x256xi1>
    %59 = vector.broadcast %cst_24 : f32 to vector<4x256xf32>
    %60 = arith.select %58, %2, %59 : vector<4x256xi1>, vector<4x256xf32>
    %cst_25 = arith.constant dense<0.000000e+00> : vector<4xf32>
    %61 = vector.multi_reduction <add>, %60, %cst_25 [1] : vector<4x256xf32> to vector<4xf32>
    %62 = vector.shape_cast %61 : vector<4xf32> to vector<4x1xf32>
    %c0_26 = arith.constant 0 : index
    %c4_27 = arith.constant 4 : index
    %63 = vector.load %arg6[%c0_26, %c4_27] : memref<4x8xf32, #tpu.memory_space<vmem>>, vector<4x1xf32>
    tpu.vector_store %arg6[%c0_26, %c4_27], %62 {strides = array<i32>} : memref<4x8xf32, #tpu.memory_space<vmem>>, vector<4x1xf32>,
    %64 = arith.index_cast %8 : i32 to index
    %c5 = arith.constant 5 : index
    %65 = memref.load %arg1[%64, %c5] : memref<4x8xi32, #tpu.memory_space<smem>>
    %66 = vector.broadcast %65 : i32 to vector<1x256xi32>
    %67 = arith.cmpi eq, %0, %66 : vector<1x256xi32>
    %cst_28 = arith.constant 0.000000e+00 : f32
    %68 = vector.shape_cast %67 : vector<1x256xi1> to vector<1x256xi1>
    %69 = vector.broadcast %68 : vector<1x256xi1> to vector<4x256xi1>
    %70 = vector.broadcast %cst_28 : f32 to vector<4x256xf32>
    %71 = arith.select %69, %2, %70 : vector<4x256xi1>, vector<4x256xf32>
    %cst_29 = arith.constant dense<0.000000e+00> : vector<4xf32>
    %72 = vector.multi_reduction <add>, %71, %cst_29 [1] : vector<4x256xf32> to vector<4xf32>
    %73 = vector.shape_cast %72 : vector<4xf32> to vector<4x1xf32>
    %c0_30 = arith.constant 0 : index
    %c5_31 = arith.constant 5 : index
    %74 = vector.load %arg6[%c0_30, %c5_31] : memref<4x8xf32, #tpu.memory_space<vmem>>, vector<4x1xf32>
    tpu.vector_store %arg6[%c0_30, %c5_31], %73 {strides = array<i32>} : memref<4x8xf32, #tpu.memory_space<vmem>>, vector<4x1xf32>,
    %75 = arith.index_cast %8 : i32 to index
    %c6 = arith.constant 6 : index
    %76 = memref.load %arg1[%75, %c6] : memref<4x8xi32, #tpu.memory_space<smem>>
    %77 = vector.broadcast %76 : i32 to vector<1x256xi32>
    %78 = arith.cmpi eq, %0, %77 : vector<1x256xi32>
    %cst_32 = arith.constant 0.000000e+00 : f32
    %79 = vector.shape_cast %78 : vector<1x256xi1> to vector<1x256xi1>
    %80 = vector.broadcast %79 : vector<1x256xi1> to vector<4x256xi1>
    %81 = vector.broadcast %cst_32 : f32 to vector<4x256xf32>
    %82 = arith.select %80, %2, %81 : vector<4x256xi1>, vector<4x256xf32>
    %cst_33 = arith.constant dense<0.000000e+00> : vector<4xf32>
    %83 = vector.multi_reduction <add>, %82, %cst_33 [1] : vector<4x256xf32> to vector<4xf32>
    %84 = vector.shape_cast %83 : vector<4xf32> to vector<4x1xf32>
    %c0_34 = arith.constant 0 : index
    %c6_35 = arith.constant 6 : index
    %85 = vector.load %arg6[%c0_34, %c6_35] : memref<4x8xf32, #tpu.memory_space<vmem>>, vector<4x1xf32>
    tpu.vector_store %arg6[%c0_34, %c6_35], %84 {strides = array<i32>} : memref<4x8xf32, #tpu.memory_space<vmem>>, vector<4x1xf32>,
    %86 = arith.index_cast %8 : i32 to index
    %c7 = arith.constant 7 : index
    %87 = memref.load %arg1[%86, %c7] : memref<4x8xi32, #tpu.memory_space<smem>>
    %88 = vector.broadcast %87 : i32 to vector<1x256xi32>
    %89 = arith.cmpi eq, %0, %88 : vector<1x256xi32>
    %cst_36 = arith.constant 0.000000e+00 : f32
    %90 = vector.shape_cast %89 : vector<1x256xi1> to vector<1x256xi1>
    %91 = vector.broadcast %90 : vector<1x256xi1> to vector<4x256xi1>
    %92 = vector.broadcast %cst_36 : f32 to vector<4x256xf32>
    %93 = arith.select %91, %2, %92 : vector<4x256xi1>, vector<4x256xf32>
    %cst_37 = arith.constant dense<0.000000e+00> : vector<4xf32>
    %94 = vector.multi_reduction <add>, %93, %cst_37 [1] : vector<4x256xf32> to vector<4xf32>
    %95 = vector.shape_cast %94 : vector<4xf32> to vector<4x1xf32>
    %c0_38 = arith.constant 0 : index
    %c7_39 = arith.constant 7 : index
    %96 = vector.load %arg6[%c0_38, %c7_39] : memref<4x8xf32, #tpu.memory_space<vmem>>, vector<4x1xf32>
    tpu.vector_store %arg6[%c0_38, %c7_39], %95 {strides = array<i32>} : memref<4x8xf32, #tpu.memory_space<vmem>>, vector<4x1xf32>,
    %c0_40 = arith.constant 0 : index
    %c0_41 = arith.constant 0 : index
    %97 = vector.load %arg6[%c0_40, %c0_41] : memref<4x8xf32, #tpu.memory_space<vmem>>, vector<4x8xf32>
    %98 = vector.broadcast %6 : vector<1x8xf32> to vector<4x8xf32>
    %99 = arith.mulf %97, %98 : vector<4x8xf32>
    %100 = vector.broadcast %6 : vector<1x8xf32> to vector<4x8xf32>
    %101 = arith.mulf %4, %100 : vector<4x8xf32>
    %102 = arith.subf %99, %101 : vector<4x8xf32>
    %103 = math.absf %102 : vector<4x8xf32>
    %104 = vector.shape_cast %103 : vector<4x8xf32> to vector<1x4x8xf32>
    %cst_42 = arith.constant dense<0.000000e+00> : vector<1xf32>
    %105 = vector.multi_reduction <add>, %104, %cst_42 [1, 2] : vector<1x4x8xf32> to vector<1xf32>
    %106 = vector.shape_cast %105 : vector<1xf32> to vector<1x1x1xf32>
    %107 = vector.extract %106[0, 0, 0] : f32 from vector<1x1x1xf32>
    %cst_43 = arith.constant 0.000000e+00 : f32
    %108 = arith.addf %cst_43, %107 : f32
    %c1_44 = arith.constant 1 : index
    %c0_45 = arith.constant 0 : index
    %c0_46 = arith.constant 0 : index
    %109 = vector.load %arg2[%c1_44, %c0_45, %c0_46] : memref<2x4x256xf32, #tpu.memory_space<vmem>>, vector<1x4x256xf32>
    %110 = vector.shape_cast %109 : vector<1x4x256xf32> to vector<4x256xf32>
    %c1_47 = arith.constant 1 : index
    %c0_48 = arith.constant 0 : index
    %c0_49 = arith.constant 0 : index
    %111 = vector.load %arg3[%c1_47, %c0_48, %c0_49] : memref<2x4x8xf32, #tpu.memory_space<vmem>>, vector<1x4x8xf32>
    %112 = vector.shape_cast %111 : vector<1x4x8xf32> to vector<4x8xf32>
    %c1_50 = arith.constant 1 : index
    %c0_51 = arith.constant 0 : index
    %c0_52 = arith.constant 0 : index
    %113 = vector.load %arg4[%c1_50, %c0_51, %c0_52] : memref<2x1x8xf32, #tpu.memory_space<vmem>>, vector<1x1x8xf32>
    %114 = vector.shape_cast %113 : vector<1x1x8xf32> to vector<1x8xf32>
    %c2_i32_53 = arith.constant 2 : i32
    %115 = arith.muli %arg0, %c2_i32_53 : i32
    %c1_i32 = arith.constant 1 : i32
    %116 = arith.addi %115, %c1_i32 : i32
    %117 = arith.index_cast %116 : i32 to index
    %c0_54 = arith.constant 0 : index
    %118 = memref.load %arg1[%117, %c0_54] : memref<4x8xi32, #tpu.memory_space<smem>>
    %119 = vector.broadcast %118 : i32 to vector<1x256xi32>
    %120 = arith.cmpi eq, %0, %119 : vector<1x256xi32>
    %cst_55 = arith.constant 0.000000e+00 : f32
    %121 = vector.shape_cast %120 : vector<1x256xi1> to vector<1x256xi1>
    %122 = vector.broadcast %121 : vector<1x256xi1> to vector<4x256xi1>
    %123 = vector.broadcast %cst_55 : f32 to vector<4x256xf32>
    %124 = arith.select %122, %110, %123 : vector<4x256xi1>, vector<4x256xf32>
    %cst_56 = arith.constant dense<0.000000e+00> : vector<4xf32>
    %125 = vector.multi_reduction <add>, %124, %cst_56 [1] : vector<4x256xf32> to vector<4xf32>
    %126 = vector.shape_cast %125 : vector<4xf32> to vector<4x1xf32>
    %c0_57 = arith.constant 0 : index
    %c0_58 = arith.constant 0 : index
    %127 = vector.load %arg6[%c0_57, %c0_58] : memref<4x8xf32, #tpu.memory_space<vmem>>, vector<4x1xf32>
    tpu.vector_store %arg6[%c0_57, %c0_58], %126 {strides = array<i32>} : memref<4x8xf32, #tpu.memory_space<vmem>>, vector<4x1xf32>,
    %128 = arith.index_cast %116 : i32 to index
    %c1_59 = arith.constant 1 : index
    %129 = memref.load %arg1[%128, %c1_59] : memref<4x8xi32, #tpu.memory_space<smem>>
    %130 = vector.broadcast %129 : i32 to vector<1x256xi32>
    %131 = arith.cmpi eq, %0, %130 : vector<1x256xi32>
    %cst_60 = arith.constant 0.000000e+00 : f32
    %132 = vector.shape_cast %131 : vector<1x256xi1> to vector<1x256xi1>
    %133 = vector.broadcast %132 : vector<1x256xi1> to vector<4x256xi1>
    %134 = vector.broadcast %cst_60 : f32 to vector<4x256xf32>
    %135 = arith.select %133, %110, %134 : vector<4x256xi1>, vector<4x256xf32>
    %cst_61 = arith.constant dense<0.000000e+00> : vector<4xf32>
    %136 = vector.multi_reduction <add>, %135, %cst_61 [1] : vector<4x256xf32> to vector<4xf32>
    %137 = vector.shape_cast %136 : vector<4xf32> to vector<4x1xf32>
    %c0_62 = arith.constant 0 : index
    %c1_63 = arith.constant 1 : index
    %138 = vector.load %arg6[%c0_62, %c1_63] : memref<4x8xf32, #tpu.memory_space<vmem>>, vector<4x1xf32>
    tpu.vector_store %arg6[%c0_62, %c1_63], %137 {strides = array<i32>} : memref<4x8xf32, #tpu.memory_space<vmem>>, vector<4x1xf32>,
    %139 = arith.index_cast %116 : i32 to index
    %c2_64 = arith.constant 2 : index
    %140 = memref.load %arg1[%139, %c2_64] : memref<4x8xi32, #tpu.memory_space<smem>>
    %141 = vector.broadcast %140 : i32 to vector<1x256xi32>
    %142 = arith.cmpi eq, %0, %141 : vector<1x256xi32>
    %cst_65 = arith.constant 0.000000e+00 : f32
    %143 = vector.shape_cast %142 : vector<1x256xi1> to vector<1x256xi1>
    %144 = vector.broadcast %143 : vector<1x256xi1> to vector<4x256xi1>
    %145 = vector.broadcast %cst_65 : f32 to vector<4x256xf32>
    %146 = arith.select %144, %110, %145 : vector<4x256xi1>, vector<4x256xf32>
    %cst_66 = arith.constant dense<0.000000e+00> : vector<4xf32>
    %147 = vector.multi_reduction <add>, %146, %cst_66 [1] : vector<4x256xf32> to vector<4xf32>
    %148 = vector.shape_cast %147 : vector<4xf32> to vector<4x1xf32>
    %c0_67 = arith.constant 0 : index
    %c2_68 = arith.constant 2 : index
    %149 = vector.load %arg6[%c0_67, %c2_68] : memref<4x8xf32, #tpu.memory_space<vmem>>, vector<4x1xf32>
    tpu.vector_store %arg6[%c0_67, %c2_68], %148 {strides = array<i32>} : memref<4x8xf32, #tpu.memory_space<vmem>>, vector<4x1xf32>,
    %150 = arith.index_cast %116 : i32 to index
    %c3_69 = arith.constant 3 : index
    %151 = memref.load %arg1[%150, %c3_69] : memref<4x8xi32, #tpu.memory_space<smem>>
    %152 = vector.broadcast %151 : i32 to vector<1x256xi32>
    %153 = arith.cmpi eq, %0, %152 : vector<1x256xi32>
    %cst_70 = arith.constant 0.000000e+00 : f32
    %154 = vector.shape_cast %153 : vector<1x256xi1> to vector<1x256xi1>
    %155 = vector.broadcast %154 : vector<1x256xi1> to vector<4x256xi1>
    %156 = vector.broadcast %cst_70 : f32 to vector<4x256xf32>
    %157 = arith.select %155, %110, %156 : vector<4x256xi1>, vector<4x256xf32>
    %cst_71 = arith.constant dense<0.000000e+00> : vector<4xf32>
    %158 = vector.multi_reduction <add>, %157, %cst_71 [1] : vector<4x256xf32> to vector<4xf32>
    %159 = vector.shape_cast %158 : vector<4xf32> to vector<4x1xf32>
    %c0_72 = arith.constant 0 : index
    %c3_73 = arith.constant 3 : index
    %160 = vector.load %arg6[%c0_72, %c3_73] : memref<4x8xf32, #tpu.memory_space<vmem>>, vector<4x1xf32>
    tpu.vector_store %arg6[%c0_72, %c3_73], %159 {strides = array<i32>} : memref<4x8xf32, #tpu.memory_space<vmem>>, vector<4x1xf32>,
    %161 = arith.index_cast %116 : i32 to index
    %c4_74 = arith.constant 4 : index
    %162 = memref.load %arg1[%161, %c4_74] : memref<4x8xi32, #tpu.memory_space<smem>>
    %163 = vector.broadcast %162 : i32 to vector<1x256xi32>
    %164 = arith.cmpi eq, %0, %163 : vector<1x256xi32>
    %cst_75 = arith.constant 0.000000e+00 : f32
    %165 = vector.shape_cast %164 : vector<1x256xi1> to vector<1x256xi1>
    %166 = vector.broadcast %165 : vector<1x256xi1> to vector<4x256xi1>
    %167 = vector.broadcast %cst_75 : f32 to vector<4x256xf32>
    %168 = arith.select %166, %110, %167 : vector<4x256xi1>, vector<4x256xf32>
    %cst_76 = arith.constant dense<0.000000e+00> : vector<4xf32>
    %169 = vector.multi_reduction <add>, %168, %cst_76 [1] : vector<4x256xf32> to vector<4xf32>
    %170 = vector.shape_cast %169 : vector<4xf32> to vector<4x1xf32>
    %c0_77 = arith.constant 0 : index
    %c4_78 = arith.constant 4 : index
    %171 = vector.load %arg6[%c0_77, %c4_78] : memref<4x8xf32, #tpu.memory_space<vmem>>, vector<4x1xf32>
    tpu.vector_store %arg6[%c0_77, %c4_78], %170 {strides = array<i32>} : memref<4x8xf32, #tpu.memory_space<vmem>>, vector<4x1xf32>,
    %172 = arith.index_cast %116 : i32 to index
    %c5_79 = arith.constant 5 : index
    %173 = memref.load %arg1[%172, %c5_79] : memref<4x8xi32, #tpu.memory_space<smem>>
    %174 = vector.broadcast %173 : i32 to vector<1x256xi32>
    %175 = arith.cmpi eq, %0, %174 : vector<1x256xi32>
    %cst_80 = arith.constant 0.000000e+00 : f32
    %176 = vector.shape_cast %175 : vector<1x256xi1> to vector<1x256xi1>
    %177 = vector.broadcast %176 : vector<1x256xi1> to vector<4x256xi1>
    %178 = vector.broadcast %cst_80 : f32 to vector<4x256xf32>
    %179 = arith.select %177, %110, %178 : vector<4x256xi1>, vector<4x256xf32>
    %cst_81 = arith.constant dense<0.000000e+00> : vector<4xf32>
    %180 = vector.multi_reduction <add>, %179, %cst_81 [1] : vector<4x256xf32> to vector<4xf32>
    %181 = vector.shape_cast %180 : vector<4xf32> to vector<4x1xf32>
    %c0_82 = arith.constant 0 : index
    %c5_83 = arith.constant 5 : index
    %182 = vector.load %arg6[%c0_82, %c5_83] : memref<4x8xf32, #tpu.memory_space<vmem>>, vector<4x1xf32>
    tpu.vector_store %arg6[%c0_82, %c5_83], %181 {strides = array<i32>} : memref<4x8xf32, #tpu.memory_space<vmem>>, vector<4x1xf32>,
    %183 = arith.index_cast %116 : i32 to index
    %c6_84 = arith.constant 6 : index
    %184 = memref.load %arg1[%183, %c6_84] : memref<4x8xi32, #tpu.memory_space<smem>>
    %185 = vector.broadcast %184 : i32 to vector<1x256xi32>
    %186 = arith.cmpi eq, %0, %185 : vector<1x256xi32>
    %cst_85 = arith.constant 0.000000e+00 : f32
    %187 = vector.shape_cast %186 : vector<1x256xi1> to vector<1x256xi1>
    %188 = vector.broadcast %187 : vector<1x256xi1> to vector<4x256xi1>
    %189 = vector.broadcast %cst_85 : f32 to vector<4x256xf32>
    %190 = arith.select %188, %110, %189 : vector<4x256xi1>, vector<4x256xf32>
    %cst_86 = arith.constant dense<0.000000e+00> : vector<4xf32>
    %191 = vector.multi_reduction <add>, %190, %cst_86 [1] : vector<4x256xf32> to vector<4xf32>
    %192 = vector.shape_cast %191 : vector<4xf32> to vector<4x1xf32>
    %c0_87 = arith.constant 0 : index
    %c6_88 = arith.constant 6 : index
    %193 = vector.load %arg6[%c0_87, %c6_88] : memref<4x8xf32, #tpu.memory_space<vmem>>, vector<4x1xf32>
    tpu.vector_store %arg6[%c0_87, %c6_88], %192 {strides = array<i32>} : memref<4x8xf32, #tpu.memory_space<vmem>>, vector<4x1xf32>,
    %194 = arith.index_cast %116 : i32 to index
    %c7_89 = arith.constant 7 : index
    %195 = memref.load %arg1[%194, %c7_89] : memref<4x8xi32, #tpu.memory_space<smem>>
    %196 = vector.broadcast %195 : i32 to vector<1x256xi32>
    %197 = arith.cmpi eq, %0, %196 : vector<1x256xi32>
    %cst_90 = arith.constant 0.000000e+00 : f32
    %198 = vector.shape_cast %197 : vector<1x256xi1> to vector<1x256xi1>
    %199 = vector.broadcast %198 : vector<1x256xi1> to vector<4x256xi1>
    %200 = vector.broadcast %cst_90 : f32 to vector<4x256xf32>
    %201 = arith.select %199, %110, %200 : vector<4x256xi1>, vector<4x256xf32>
    %cst_91 = arith.constant dense<0.000000e+00> : vector<4xf32>
    %202 = vector.multi_reduction <add>, %201, %cst_91 [1] : vector<4x256xf32> to vector<4xf32>
    %203 = vector.shape_cast %202 : vector<4xf32> to vector<4x1xf32>
    %c0_92 = arith.constant 0 : index
    %c7_93 = arith.constant 7 : index
    %204 = vector.load %arg6[%c0_92, %c7_93] : memref<4x8xf32, #tpu.memory_space<vmem>>, vector<4x1xf32>
    tpu.vector_store %arg6[%c0_92, %c7_93], %203 {strides = array<i32>} : memref<4x8xf32, #tpu.memory_space<vmem>>, vector<4x1xf32>,
    %c0_94 = arith.constant 0 : index
    %c0_95 = arith.constant 0 : index
    %205 = vector.load %arg6[%c0_94, %c0_95] : memref<4x8xf32, #tpu.memory_space<vmem>>, vector<4x8xf32>
    %206 = vector.broadcast %114 : vector<1x8xf32> to vector<4x8xf32>
    %207 = arith.mulf %205, %206 : vector<4x8xf32>
    %208 = vector.broadcast %114 : vector<1x8xf32> to vector<4x8xf32>
    %209 = arith.mulf %112, %208 : vector<4x8xf32>
    %210 = arith.subf %207, %209 : vector<4x8xf32>
    %211 = math.absf %210 : vector<4x8xf32>
    %212 = vector.shape_cast %211 : vector<4x8xf32> to vector<1x4x8xf32>
    %cst_96 = arith.constant dense<0.000000e+00> : vector<1xf32>
    %213 = vector.multi_reduction <add>, %212, %cst_96 [1, 2] : vector<1x4x8xf32> to vector<1xf32>
    %214 = vector.shape_cast %213 : vector<1xf32> to vector<1x1x1xf32>
    %215 = vector.extract %214[0, 0, 0] : f32 from vector<1x1x1xf32>
    %216 = arith.addf %108, %215 : f32
    %217 = vector.broadcast %216 : f32 to vector<1x128xf32>
    %c0_97 = arith.constant 0 : index
    %c0_98 = arith.constant 0 : index
    %c0_99 = arith.constant 0 : index
    %218 = vector.load %arg5[%c0_97, %c0_98, %c0_99] : memref<1x1x128xf32, #tpu.memory_space<vmem>>, vector<1x1x128xf32>
    %219 = vector.shape_cast %218 : vector<1x1x128xf32> to vector<1x128xf32>
    %220 = vector.shape_cast %217 : vector<1x128xf32> to vector<1x1x128xf32>
    tpu.vector_store %arg5[%c0_97, %c0_98, %c0_99], %220 {strides = array<i32>} : memref<1x1x128xf32, #tpu.memory_space<vmem>>, vector<1x1x128xf32>,
    return
  }
  func.func @transform_0(%arg0: i32, %arg1: memref<4x8xi32, #tpu.memory_space<smem>>) -> (i32, i32, i32) {
    %c0_i32 = arith.constant 0 : i32
    %c0_i32_0 = arith.constant 0 : i32
    %c0_i32_1 = arith.constant 0 : i32
    return %arg0, %c0_i32, %c0_i32_0 : i32, i32, i32
  }
  func.func @transform_1(%arg0: i32, %arg1: memref<4x8xi32, #tpu.memory_space<smem>>) -> (i32, i32, i32) {
    %c0_i32 = arith.constant 0 : i32
    %c0_i32_0 = arith.constant 0 : i32
    %c0_i32_1 = arith.constant 0 : i32
    return %arg0, %c0_i32, %c0_i32_0 : i32, i32, i32
  }
  func.func @transform_2(%arg0: i32, %arg1: memref<4x8xi32, #tpu.memory_space<smem>>) -> (i32, i32, i32) {
    %c0_i32 = arith.constant 0 : i32
    %c0_i32_0 = arith.constant 0 : i32
    %c0_i32_1 = arith.constant 0 : i32
    return %arg0, %c0_i32, %c0_i32_0 : i32, i32, i32
  }
  func.func @transform_3(%arg0: i32, %arg1: memref<4x8xi32, #tpu.memory_space<smem>>) -> (i32, i32, i32) {
    %c0_i32 = arith.constant 0 : i32
    %c0_i32_0 = arith.constant 0 : i32
    %c0_i32_1 = arith.constant 0 : i32
    return %arg0, %c0_i32, %c0_i32_0 : i32, i32, i32
  }
}

</mosaic_0001>

<llo_original>
// kernel: l1_loss.1
$region0: #{l1_loss.1}
  #allocation0 [shape = 'u32[]', space=smem, size = 0x4, offset = 0x4, fixed_abs, tag = 'smem constant byte address 0x4 - core index']
  #allocation1 [shape = 'u32[144,128]{1,0:T(1,128)}', space=vmem, size = 0x12000, scoped, tag = 'internal scratch']
  #allocation2 [shape = 'f32[4,8]{1,0:T(4,128)}', space=vmem, size = 0x800, scoped, tag = 'scratch operand']
  #allocation3 [shape = 's32[1]{0}', space=sflag, size = 0x4, scoped, tag = 'scoped memory for l1_loss.1']
  #allocation4 [shape = 'u8[2048]{0}', space=smem, size = 0x800, scoped, tag = 'prefetched SMEM operand 0']
  %s0 = inlined_call_operand.hbm [shape: s32[4,8], index: 0, kind: input, shape index: {}]
  %s1 = inlined_call_operand.hbm [shape: f32[4,4,256], index: 1, kind: input, shape index: {}]
  %s2 = inlined_call_operand.hbm [shape: f32[4,4,8], index: 2, kind: input, shape index: {}]
  %s3 = inlined_call_operand.hbm [shape: f32[4,1,8], index: 3, kind: input, shape index: {}]
  %s4 = inlined_call_operand.hbm [shape: f32[2,1,128], index: 4, kind: output, shape index: {}]
  %s5 = sld [smem:[#allocation0]]
  $region57: #{l1_loss.1} parent=0
    _
  %s7 = ssub.s32 1, %s5
  %s8 = scalar_select 0, %s7, %s5
  %10 = dma.hbm_to_smem %s0, 64, [#allocation4], [#allocation3]
  %11 = dma.done [#allocation3], 64
  %12 = sfence
  $region1: #{l1_loss.1} parent=0
    #allocation5 [shape = 'u8[16384]{0}', space=vmem, size = 0x4000, scoped, tag = 'input window, operand 1']
    #allocation6 [shape = 's32[2]{0}', space=sflag, size = 0x8, scoped, tag = 'scoped memory for l1_loss.1']
    #allocation7 [shape = 's32[2]{0}', space=sflag, size = 0x8, scoped, tag = 'scoped memory for l1_loss.1']
    #allocation8 [shape = 'u8[8192]{0}', space=vmem, size = 0x2000, scoped, tag = 'input window, operand 2']
    #allocation9 [shape = 's32[2]{0}', space=sflag, size = 0x8, scoped, tag = 'scoped memory for l1_loss.1']
    #allocation10 [shape = 'u8[2048]{0}', space=vmem, size = 0x800, scoped, tag = 'input window, operand 3']
    #allocation11 [shape = 'u8[1024]{0}', space=vmem, size = 0x400, scoped, tag = 'output window, operand 0']
    %13 = vsyncpa [#allocation6], 0
    %s14 = scalar_lea.sflag [#allocation6], 1
    %15 = vsyncpa %s14, 0
    %16 = vsyncpa [#allocation9], 0
    %s17 = scalar_lea.sflag [#allocation9], 1
    %18 = vsyncpa %s17, 0
    %19 = vsyncpa [#allocation7], 0
    %s20 = scalar_lea.sflag [#allocation7], 1
    %21 = vsyncpa %s20, 0
    loop: start=0, step=1, limit=4
    $region2: #{l1_loss.1} parent=1 // loop_pre_header
      _
    $region3: #{l1_loss.1} parent=1 // loop_header
      %s23 = sphi 0, %s27
      %p24 = scmp.ge.s32.totalorder %s23, 4
      %s33 = sphi 0, %s35
      %s36 = sphi 0, %s33
      %s37 = sphi 0, %s36
      %s53 = sphi 0, %s37
      %s59 = sphi 0, %s61
      %s62 = sphi 0, %s59
      %s63 = sphi 0, %s62
      %s79 = sphi 0, %s63
      %s85 = sphi 0, %s87
      %s88 = sphi 0, %s85
      %s89 = sphi 0, %s88
      %s105 = sphi 0, %s89
      %s111 = sphi 0, %s113
      %s114 = sphi 0, %s111
      %s115 = sphi 0, %s114
      %s131 = sphi 0, %s115
    $region4: #{l1_loss.1} parent=1 // loop_header_branch
      %26 = sbr.rel (%p24) target = $region8
    $region5: #{l1_loss.1} parent=1 // loop_body
      %s28 = ssub.s32 %s23, 1
      %s29 = ssub.s32 %s23, 2
      %s30 = sadd.s32 %s23, 1
      %s31 = ssub.s32 %s23, %s30
      %p32 = scmp.eq.s32.totalorder %s31, 0
      %s34 = sadd.s32 %s33, 1
      %s35 = scalar_select %p32, %s33, %s34
      %p38 = pneg %p32
      %p39 = scmp.eq.s32.totalorder %s23, 1
      %p40 = por %p38, %p39
      %p41 = scmp.ne.s32.totalorder %s33, %s36
      %p42 = scmp.eq.s32.totalorder %s23, 0
      %p43 = por %p41, %p42
      %p44 = scmp.ne.s32.totalorder %s33, %s36
      %p45 = scmp.eq.s32.totalorder %s28, 1
      %p46 = por %p44, %p45
      %p47 = scmp.ne.s32.totalorder %s36, %s37
      %p48 = scmp.eq.s32.totalorder %s28, 0
      %p49 = por %p47, %p48
      %p50 = scmp.ne.s32.totalorder %s36, %s37
      %p51 = scmp.eq.s32.totalorder %s29, 1
      %p52 = por %p50, %p51
      %p54 = scmp.ne.s32.totalorder %s37, %s53
      %p55 = scmp.eq.s32.totalorder %s29, 0
      %p56 = por %p54, %p55
      %s57 = ssub.s32 %s23, %s30
      %p58 = scmp.eq.s32.totalorder %s57, 0
      %s60 = sadd.s32 %s59, 1
      %s61 = scalar_select %p58, %s59, %s60
      %p64 = pneg %p58
      %p65 = scmp.eq.s32.totalorder %s23, 1
      %p66 = por %p64, %p65
      %p67 = scmp.ne.s32.totalorder %s59, %s62
      %p68 = scmp.eq.s32.totalorder %s23, 0
      %p69 = por %p67, %p68
      %p70 = scmp.ne.s32.totalorder %s59, %s62
      %p71 = scmp.eq.s32.totalorder %s28, 1
      %p72 = por %p70, %p71
      %p73 = scmp.ne.s32.totalorder %s62, %s63
      %p74 = scmp.eq.s32.totalorder %s28, 0
      %p75 = por %p73, %p74
      %p76 = scmp.ne.s32.totalorder %s62, %s63
      %p77 = scmp.eq.s32.totalorder %s29, 1
      %p78 = por %p76, %p77
      %p80 = scmp.ne.s32.totalorder %s63, %s79
      %p81 = scmp.eq.s32.totalorder %s29, 0
      %p82 = por %p80, %p81
      %s83 = ssub.s32 %s23, %s30
      %p84 = scmp.eq.s32.totalorder %s83, 0
      %s86 = sadd.s32 %s85, 1
      %s87 = scalar_select %p84, %s85, %s86
      %p90 = pneg %p84
      %p91 = scmp.eq.s32.totalorder %s23, 1
      %p92 = por %p90, %p91
      %p93 = scmp.ne.s32.totalorder %s85, %s88
      %p94 = scmp.eq.s32.totalorder %s23, 0
      %p95 = por %p93, %p94
      %p96 = scmp.ne.s32.totalorder %s85, %s88
      %p97 = scmp.eq.s32.totalorder %s28, 1
      %p98 = por %p96, %p97
      %p99 = scmp.ne.s32.totalorder %s88, %s89
      %p100 = scmp.eq.s32.totalorder %s28, 0
      %p101 = por %p99, %p100
      %p102 = scmp.ne.s32.totalorder %s88, %s89
      %p103 = scmp.eq.s32.totalorder %s29, 1
      %p104 = por %p102, %p103
      %p106 = scmp.ne.s32.totalorder %s89, %s105
      %p107 = scmp.eq.s32.totalorder %s29, 0
      %p108 = por %p106, %p107
      %s109 = ssub.s32 %s23, %s30
      %p110 = scmp.eq.s32.totalorder %s109, 0
      %s112 = sadd.s32 %s111, 1
      %s113 = scalar_select %p110, %s111, %s112
      %p116 = pneg %p110
      %p117 = scmp.eq.s32.totalorder %s23, 1
      %p118 = por %p116, %p117
      %p119 = scmp.ne.s32.totalorder %s111, %s114
      %p120 = scmp.eq.s32.totalorder %s23, 0
      %p121 = por %p119, %p120
      %p122 = scmp.ne.s32.totalorder %s111, %s114
      %p123 = scmp.eq.s32.totalorder %s28, 1
      %p124 = por %p122, %p123
      %p125 = scmp.ne.s32.totalorder %s114, %s115
      %p126 = scmp.eq.s32.totalorder %s28, 0
      %p127 = por %p125, %p126
      %p128 = scmp.ne.s32.totalorder %s114, %s115
      %p129 = scmp.eq.s32.totalorder %s29, 1
      %p130 = por %p128, %p129
      %p132 = scmp.ne.s32.totalorder %s115, %s131
      %p133 = scmp.eq.s32.totalorder %s29, 0
      %p134 = por %p132, %p133
      %p135 = scmp.le.s32.totalorder 1, %s23
      %p136 = scmp.lt.s32.totalorder %s23, 3
      %p137 = pnand %p135, %p136
      %p138 = pneg %p137
      // Predicated region
      $region9: #{l1_loss.1} parent=5 // pred_check
        _
      $region10: #{l1_loss.1} parent=5 // pred_check_branch
        %140 = sbr.rel (%p137) target = $region12
      $region11: #{l1_loss.1} parent=5 // pred_region
        %s141 = ssub.s32 %s23, 1
      $region12: #{l1_loss.1} parent=5 // pred_fallthru
        _
      %p142 = scmp.lt.s32.totalorder %s23, 2
      // Predicated region
      $region13: #{l1_loss.1} parent=5 // pred_check
        %p143 = pneg %p142
      $region14: #{l1_loss.1} parent=5 // pred_check_branch
        %145 = sbr.rel (%p143) target = $region16
      $region15: #{l1_loss.1} parent=5 // pred_region
        // Predicated region
        $region17: #{l1_loss.1} parent=15 // pred_check
          %p146 = pneg %p43
        $region18: #{l1_loss.1} parent=15 // pred_check_branch
          %148 = sbr.rel (%p146) target = $region20
        $region19: #{l1_loss.1} parent=15 // pred_region
          %s149 = sand.u32 %s33, 1
          %s150 = scalar_lea.sflag [#allocation6], %s149
          %s151 = sand.u32 %s33, 1
          %s152 = smul.addr %s151, 16
          %s153 = scalar_lea.vmem [#allocation5], %s152
          %s154 = smul.u32 2, %s23
          %s156 = ssub.s32 256, 256
          %157 = vsyncadd %s150, %s156
          %s158 = smul.addr %s154, 2
          %s159 = smul.addr %s158, 64
          %s160 = scalar_lea.hbm %s1, %s159
          %s161 = sshll.u32 %s153, 4
          %s162 = int_to_ptr.vmem [resolvable:$true] %s161
          %167 = dma.hbm_to_vmem [thread:$0]  %s160, 256, %s162, %s150, 128, 128, 8
        $region20: #{l1_loss.1} parent=15 // pred_fallthru
          _
        // Predicated region
        $region21: #{l1_loss.1} parent=15 // pred_check
          %p168 = pneg %p69
        $region22: #{l1_loss.1} parent=15 // pred_check_branch
          %170 = sbr.rel (%p168) target = $region24
        $region23: #{l1_loss.1} parent=15 // pred_region
          %s171 = sand.u32 %s23, 1
          %s172 = scalar_lea.sflag [#allocation9], %s171
          %s173 = sand.u32 %s59, 1
          %s174 = smul.addr %s173, 8
          %s175 = scalar_lea.vmem [#allocation8], %s174
          %s176 = smul.u32 2, %s23
          %s178 = ssub.s32 128, 128
          %179 = vsyncadd %s172, %s178
          %s180 = smul.addr %s176, 64
          %s181 = scalar_lea.hbm %s2, %s180
          %s182 = sshll.u32 %s175, 4
          %s183 = int_to_ptr.vmem [resolvable:$true] %s182
          %188 = dma.hbm_to_vmem [thread:$0]  %s181, 128, %s183, %s172, 64, 64, 4
        $region24: #{l1_loss.1} parent=15 // pred_fallthru
          _
        // Predicated region
        $region25: #{l1_loss.1} parent=15 // pred_check
          %p189 = pneg %p95
        $region26: #{l1_loss.1} parent=15 // pred_check_branch
          %191 = sbr.rel (%p189) target = $region28
        $region27: #{l1_loss.1} parent=15 // pred_region
          %s192 = sand.u32 %s23, 1
          %s193 = scalar_lea.sflag [#allocation9], %s192
          %s194 = sand.u32 %s85, 1
          %s195 = smul.addr %s194, 2
          %s196 = scalar_lea.vmem [#allocation10], %s195
          %s197 = smul.u32 2, %s23
          %s199 = ssub.s32 32, 32
          %200 = vsyncadd %s193, %s199
          %s201 = smul.addr %s197, 16
          %s202 = scalar_lea.hbm %s3, %s201
          %s203 = sshll.u32 %s196, 4
          %s204 = int_to_ptr.vmem [resolvable:$true] %s203
          %209 = dma.hbm_to_vmem [thread:$0]  %s202, 32, %s204, %s193, 16, 16, 1
        $region28: #{l1_loss.1} parent=15 // pred_fallthru
          _
      $region16: #{l1_loss.1} parent=5 // pred_fallthru
        _
      %p210 = scmp.le.s32.totalorder 1, %s23
      %p211 = scmp.lt.s32.totalorder %s23, 3
      %p212 = pnand %p210, %p211
      %p213 = pneg %p212
      // Predicated region
      $region29: #{l1_loss.1} parent=5 // pred_check
        _
      $region30: #{l1_loss.1} parent=5 // pred_check_branch
        %215 = sbr.rel (%p212) target = $region32
      $region31: #{l1_loss.1} parent=5 // pred_region
        %s216 = ssub.s32 %s23, 1
        %s217 = sand.u32 %s36, 1
        %s218 = scalar_lea.sflag [#allocation6], %s217
        %s219 = sand.u32 %s36, 1
        %s220 = smul.addr %s219, 16
        %s221 = scalar_lea.vmem [#allocation5], %s220
        // Predicated region
        $region33: #{l1_loss.1} parent=31 // pred_check
          %p222 = pneg %p49
        $region34: #{l1_loss.1} parent=31 // pred_check_branch
          %224 = sbr.rel (%p222) target = $region36
        $region35: #{l1_loss.1} parent=31 // pred_region
          %225 = dma.done %s218, 256
        $region36: #{l1_loss.1} parent=31 // pred_fallthru
          _
        %s226 = sand.u32 %s28, 1
        %s227 = scalar_lea.sflag [#allocation9], %s226
        %s228 = sand.u32 %s62, 1
        %s229 = smul.addr %s228, 8
        %s230 = scalar_lea.vmem [#allocation8], %s229
        // Predicated region
        $region37: #{l1_loss.1} parent=31 // pred_check
          %p231 = pneg %p75
        $region38: #{l1_loss.1} parent=31 // pred_check_branch
          %233 = sbr.rel (%p231) target = $region40
        $region39: #{l1_loss.1} parent=31 // pred_region
          %234 = dma.done %s227, 128
        $region40: #{l1_loss.1} parent=31 // pred_fallthru
          _
        %s235 = sand.u32 %s28, 1
        %s236 = scalar_lea.sflag [#allocation9], %s235
        %s237 = sand.u32 %s88, 1
        %s238 = smul.addr %s237, 2
        %s239 = scalar_lea.vmem [#allocation10], %s238
        // Predicated region
        $region41: #{l1_loss.1} parent=31 // pred_check
          %p240 = pneg %p101
        $region42: #{l1_loss.1} parent=31 // pred_check_branch
          %242 = sbr.rel (%p240) target = $region44
        $region43: #{l1_loss.1} parent=31 // pred_region
          %243 = dma.done %s236, 32
        $region44: #{l1_loss.1} parent=31 // pred_fallthru
          _
        %s244 = sand.u32 %s36, 1
        %s245 = scalar_lea.sflag [#allocation6], %s244
        %s246 = sand.u32 %s36, 1
        %s247 = smul.addr %s246, 16
        %s248 = scalar_lea.vmem [#allocation5], %s247
        %p249 = pneg %p49
        %p250 = pneg %p46
        %s251 = sand.u32 %s28, 1
        %s252 = scalar_lea.sflag [#allocation9], %s251
        %s253 = sand.u32 %s62, 1
        %s254 = smul.addr %s253, 8
        %s255 = scalar_lea.vmem [#allocation8], %s254
        %p256 = pneg %p75
        %p257 = pneg %p72
        %s258 = sand.u32 %s28, 1
        %s259 = scalar_lea.sflag [#allocation9], %s258
        %s260 = sand.u32 %s88, 1
        %s261 = smul.addr %s260, 2
        %s262 = scalar_lea.vmem [#allocation10], %s261
        %p263 = pneg %p101
        %p264 = pneg %p98
        %p265 = pneg %p127
        %p266 = pneg %p124
        %s267 = sand.u32 %s114, 1
        %s268 = scalar_lea.sflag [#allocation7], %s267
        %s269 = sand.u32 %s114, 1
        %s270 = scalar_lea.vmem [#allocation11], %s269
        %s271 = smul.u32 2, %s28
        %s272 = smul.u32 2, %s28
        %s273 = smul.u32 2, %s28
        %v274 = vlaneseq
        %v275 = vand.u32 %v274, 127
        %v276 = vadd.s32 %v275, 128
        %v277 = vld [vmem:[%s221] sm:$0xff]
        %v278 = vld [vmem:[%s230] sm:$0xf]
        %v279 = vld [vmem:[%s239] sm:$0x1]
        %s280 = smul.u32 %s28, 2
        %s281 = smul.u32 %s280, 128
        %s282 = sld [smem:[#allocation4 + %s281]]
        %v283 = vstv %s282
        %vm284 = vcmp.eq.s32.totalorder %v275, %v283
        %vm285 = vcmp.eq.s32.totalorder %v276, %v283
        %v286 = vsel %vm284, 1, 0
        %v287 = vsel %vm285, 1, 0
        %vm288 = vcmp.eq.s32.totalorder %v286, 1
        %vm289 = vcmp.eq.s32.totalorder %v287, 1
        %v291 = vcombine.high %v277, %v277
        %v293 = vsel %vm288, %v277, 0.0
        %v294 = vsel %vm289, %v291, 0.0
        %vm295 = vcmask 1043456
        %v296 = vsel %vm295, %v293, 0.0
        %v297 = vsel %vm295, %v294, 0.0
        %v298 = vadd.f32 %v296, %v297
        %299 = vadd.xlane.f32.xlu0 %v298
        %v300 = vpop.xlane.xlu0 %299
        %vm301 = vcmask 3072
        %302 = vst.msk [vmem:[#allocation2] sm:$0xf] %vm301, %v300
        %s303 = sadd.s32 %s281, 1
        %s304 = sld [smem:[#allocation4 + %s303]]
        %v305 = vstv %s304
        %vm306 = vcmp.eq.s32.totalorder %v275, %v305
        %vm307 = vcmp.eq.s32.totalorder %v276, %v305
        %v308 = vsel %vm306, 1, 0
        %v309 = vsel %vm307, 1, 0
        %vm310 = vcmp.eq.s32.totalorder %v308, 1
        %vm311 = vcmp.eq.s32.totalorder %v309, 1
        %v312 = vsel %vm310, %v277, 0.0
        %v313 = vsel %vm311, %v291, 0.0
        %v314 = vsel %vm295, %v312, 0.0
        %v315 = vsel %vm295, %v313, 0.0
        %v316 = vadd.f32 %v314, %v315
        %317 = vadd.xlane.f32.xlu0 %v316
        %v318 = vpop.xlane.xlu0 %317
        %vm319 = vcmask 11272
        %320 = vst.msk [vmem:[#allocation2] sm:$0xf] %vm319, %v318
        %s321 = sadd.s32 %s281, 2
        %s322 = sld [smem:[#allocation4 + %s321]]
        %v323 = vstv %s322
        %vm324 = vcmp.eq.s32.totalorder %v275, %v323
        %vm325 = vcmp.eq.s32.totalorder %v276, %v323
        %v326 = vsel %vm324, 1, 0
        %v327 = vsel %vm325, 1, 0
        %vm328 = vcmp.eq.s32.totalorder %v326, 1
        %vm329 = vcmp.eq.s32.totalorder %v327, 1
        %v330 = vsel %vm328, %v277, 0.0
        %v331 = vsel %vm329, %v291, 0.0
        %v332 = vsel %vm295, %v330, 0.0
        %v333 = vsel %vm295, %v331, 0.0
        %v334 = vadd.f32 %v332, %v333
        %335 = vadd.xlane.f32.xlu0 %v334
        %v336 = vpop.xlane.xlu0 %335
        %vm337 = vcmask 19472
        %338 = vst.msk [vmem:[#allocation2] sm:$0xf] %vm337, %v336
        %s339 = sadd.s32 %s281, 3
        %s340 = sld [smem:[#allocation4 + %s339]]
        %v341 = vstv %s340
        %vm342 = vcmp.eq.s32.totalorder %v275, %v341
        %vm343 = vcmp.eq.s32.totalorder %v276, %v341
        %v344 = vsel %vm342, 1, 0
        %v345 = vsel %vm343, 1, 0
        %vm346 = vcmp.eq.s32.totalorder %v344, 1
        %vm347 = vcmp.eq.s32.totalorder %v345, 1
        %v348 = vsel %vm346, %v277, 0.0
        %v349 = vsel %vm347, %v291, 0.0
        %v350 = vsel %vm295, %v348, 0.0
        %v351 = vsel %vm295, %v349, 0.0
        %v352 = vadd.f32 %v350, %v351
        %353 = vadd.xlane.f32.xlu0 %v352
        %v354 = vpop.xlane.xlu0 %353
        %vm355 = vcmask 27672
        %356 = vst.msk [vmem:[#allocation2] sm:$0xf] %vm355, %v354
        %s357 = sadd.s32 %s281, 4
        %s358 = sld [smem:[#allocation4 + %s357]]
        %v359 = vstv %s358
        %vm360 = vcmp.eq.s32.totalorder %v275, %v359
        %vm361 = vcmp.eq.s32.totalorder %v276, %v359
        %v362 = vsel %vm360, 1, 0
        %v363 = vsel %vm361, 1, 0
        %vm364 = vcmp.eq.s32.totalorder %v362, 1
        %vm365 = vcmp.eq.s32.totalorder %v363, 1
        %v366 = vsel %vm364, %v277, 0.0
        %v367 = vsel %vm365, %v291, 0.0
        %v368 = vsel %vm295, %v366, 0.0
        %v369 = vsel %vm295, %v367, 0.0
        %v370 = vadd.f32 %v368, %v369
        %371 = vadd.xlane.f32.xlu0 %v370
        %v372 = vpop.xlane.xlu0 %371
        %vm373 = vcmask 35872
        %374 = vst.msk [vmem:[#allocation2] sm:$0xf] %vm373, %v372
        %s375 = sadd.s32 %s281, 5
        %s376 = sld [smem:[#allocation4 + %s375]]
        %v377 = vstv %s376
        %vm378 = vcmp.eq.s32.totalorder %v275, %v377
        %vm379 = vcmp.eq.s32.totalorder %v276, %v377
        %v380 = vsel %vm378, 1, 0
        %v381 = vsel %vm379, 1, 0
        %vm382 = vcmp.eq.s32.totalorder %v380, 1
        %vm383 = vcmp.eq.s32.totalorder %v381, 1
        %v384 = vsel %vm382, %v277, 0.0
        %v385 = vsel %vm383, %v291, 0.0
        %v386 = vsel %vm295, %v384, 0.0
        %v387 = vsel %vm295, %v385, 0.0
        %v388 = vadd.f32 %v386, %v387
        %389 = vadd.xlane.f32.xlu0 %v388
        %v390 = vpop.xlane.xlu0 %389
        %vm391 = vcmask 44072
        %392 = vst.msk [vmem:[#allocation2] sm:$0xf] %vm391, %v390
        %s393 = sadd.s32 %s281, 6
        %s394 = sld [smem:[#allocation4 + %s393]]
        %v395 = vstv %s394
        %vm396 = vcmp.eq.s32.totalorder %v275, %v395
        %vm397 = vcmp.eq.s32.totalorder %v276, %v395
        %v398 = vsel %vm396, 1, 0
        %v399 = vsel %vm397, 1, 0
        %vm400 = vcmp.eq.s32.totalorder %v398, 1
        %vm401 = vcmp.eq.s32.totalorder %v399, 1
        %v402 = vsel %vm400, %v277, 0.0
        %v403 = vsel %vm401, %v291, 0.0
        %v404 = vsel %vm295, %v402, 0.0
        %v405 = vsel %vm295, %v403, 0.0
        %v406 = vadd.f32 %v404, %v405
        %407 = vadd.xlane.f32.xlu0 %v406
        %v408 = vpop.xlane.xlu0 %407
        %vm409 = vcmask 52272
        %410 = vst.msk [vmem:[#allocation2] sm:$0xf] %vm409, %v408
        %s411 = sadd.s32 %s281, 7
        %s412 = sld [smem:[#allocation4 + %s411]]
        %v413 = vstv %s412
        %vm414 = vcmp.eq.s32.totalorder %v275, %v413
        %vm415 = vcmp.eq.s32.totalorder %v276, %v413
        %v416 = vsel %vm414, 1, 0
        %v417 = vsel %vm415, 1, 0
        %vm418 = vcmp.eq.s32.totalorder %v416, 1
        %vm419 = vcmp.eq.s32.totalorder %v417, 1
        %v420 = vsel %vm418, %v277, 0.0
        %v421 = vsel %vm419, %v291, 0.0
        %v422 = vsel %vm295, %v420, 0.0
        %v423 = vsel %vm295, %v421, 0.0
        %v424 = vadd.f32 %v422, %v423
        %425 = vadd.xlane.f32.xlu0 %v424
        %v426 = vpop.xlane.xlu0 %425
        %vm427 = vcmask 60472
        %428 = vst.msk [vmem:[#allocation2] sm:$0xf] %vm427, %v426
        %v429 = vld [vmem:[#allocation2] sm:$0xf]
        %v431 = vlaneseq
        %v432 = vshrl.u32 %v431, 7
        %v433 = vsub.s32 0, %v432
        %v434 = vrot.slane %v279, %v433
        %v436 = vmul.f32 %v429, %v434
        %v437 = vmul.f32 %v278, %v434
        %v438 = vsub.f32 %v436, %v437
        %v439 = vand.u32 2147483647, %v438
        %vm440 = vcmask 60416
        %v441 = vsel %vm440, %v439, 0.0
        %442 = vadd.xlane.f32.xlu0 %v441
        %v443 = vpop.xlane.xlu0 %442
        %v444 = vrot.slane %v443, 4
        %v445 = vadd.f32 %v443, %v444
        %v446 = vrot.slane %v445, 2
        %v447 = vadd.f32 %v445, %v446
        %v448 = vrot.slane %v447, 1
        %v449 = vadd.f32 %v447, %v448
        %s450 = vtos %v449
        %s451 = sadd.f32 %s450, 0.0
        %s452 = scalar_lea.vmem %s221, 8 [#allocation5]
        %v453 = vld [vmem:[%s452] sm:$0xff]
        %s454 = scalar_lea.vmem %s230, 4 [#allocation8]
        %v455 = vld [vmem:[%s454] sm:$0xf]
        %s456 = scalar_lea.vmem %s239, 1 [#allocation10]
        %v457 = vld [vmem:[%s456] sm:$0x1]
        %s458 = sadd.s32 %s280, 1
        %s459 = smul.u32 %s458, 128
        %s460 = sld [smem:[#allocation4 + %s459]]
        %v461 = vstv %s460
        %vm462 = vcmp.eq.s32.totalorder %v275, %v461
        %vm463 = vcmp.eq.s32.totalorder %v276, %v461
        %v464 = vsel %vm462, 1, 0
        %v465 = vsel %vm463, 1, 0
        %vm466 = vcmp.eq.s32.totalorder %v464, 1
        %vm467 = vcmp.eq.s32.totalorder %v465, 1
        %v469 = vcombine.high %v453, %v453
        %v471 = vsel %vm466, %v453, 0.0
        %v472 = vsel %vm467, %v469, 0.0
        %v473 = vsel %vm295, %v471, 0.0
        %v474 = vsel %vm295, %v472, 0.0
        %v475 = vadd.f32 %v473, %v474
        %476 = vadd.xlane.f32.xlu0 %v475
        %v477 = vpop.xlane.xlu0 %476
        %478 = vst.msk [vmem:[#allocation2] sm:$0xf] %vm301, %v477
        %s479 = sadd.s32 %s459, 1
        %s480 = sld [smem:[#allocation4 + %s479]]
        %v481 = vstv %s480
        %vm482 = vcmp.eq.s32.totalorder %v275, %v481
        %vm483 = vcmp.eq.s32.totalorder %v276, %v481
        %v484 = vsel %vm482, 1, 0
        %v485 = vsel %vm483, 1, 0
        %vm486 = vcmp.eq.s32.totalorder %v484, 1
        %vm487 = vcmp.eq.s32.totalorder %v485, 1
        %v488 = vsel %vm486, %v453, 0.0
        %v489 = vsel %vm487, %v469, 0.0
        %v490 = vsel %vm295, %v488, 0.0
        %v491 = vsel %vm295, %v489, 0.0
        %v492 = vadd.f32 %v490, %v491
        %493 = vadd.xlane.f32.xlu0 %v492
        %v494 = vpop.xlane.xlu0 %493
        %495 = vst.msk [vmem:[#allocation2] sm:$0xf] %vm319, %v494
        %s496 = sadd.s32 %s459, 2
        %s497 = sld [smem:[#allocation4 + %s496]]
        %v498 = vstv %s497
        %vm499 = vcmp.eq.s32.totalorder %v275, %v498
        %vm500 = vcmp.eq.s32.totalorder %v276, %v498
        %v501 = vsel %vm499, 1, 0
        %v502 = vsel %vm500, 1, 0
        %vm503 = vcmp.eq.s32.totalorder %v501, 1
        %vm504 = vcmp.eq.s32.totalorder %v502, 1
        %v505 = vsel %vm503, %v453, 0.0
        %v506 = vsel %vm504, %v469, 0.0
        %v507 = vsel %vm295, %v505, 0.0
        %v508 = vsel %vm295, %v506, 0.0
        %v509 = vadd.f32 %v507, %v508
        %510 = vadd.xlane.f32.xlu0 %v509
        %v511 = vpop.xlane.xlu0 %510
        %512 = vst.msk [vmem:[#allocation2] sm:$0xf] %vm337, %v511
        %s513 = sadd.s32 %s459, 3
        %s514 = sld [smem:[#allocation4 + %s513]]
        %v515 = vstv %s514
        %vm516 = vcmp.eq.s32.totalorder %v275, %v515
        %vm517 = vcmp.eq.s32.totalorder %v276, %v515
        %v518 = vsel %vm516, 1, 0
        %v519 = vsel %vm517, 1, 0
        %vm520 = vcmp.eq.s32.totalorder %v518, 1
        %vm521 = vcmp.eq.s32.totalorder %v519, 1
        %v522 = vsel %vm520, %v453, 0.0
        %v523 = vsel %vm521, %v469, 0.0
        %v524 = vsel %vm295, %v522, 0.0
        %v525 = vsel %vm295, %v523, 0.0
        %v526 = vadd.f32 %v524, %v525
        %527 = vadd.xlane.f32.xlu0 %v526
        %v528 = vpop.xlane.xlu0 %527
        %529 = vst.msk [vmem:[#allocation2] sm:$0xf] %vm355, %v528
        %s530 = sadd.s32 %s459, 4
        %s531 = sld [smem:[#allocation4 + %s530]]
        %v532 = vstv %s531
        %vm533 = vcmp.eq.s32.totalorder %v275, %v532
        %vm534 = vcmp.eq.s32.totalorder %v276, %v532
        %v535 = vsel %vm533, 1, 0
        %v536 = vsel %vm534, 1, 0
        %vm537 = vcmp.eq.s32.totalorder %v535, 1
        %vm538 = vcmp.eq.s32.totalorder %v536, 1
        %v539 = vsel %vm537, %v453, 0.0
        %v540 = vsel %vm538, %v469, 0.0
        %v541 = vsel %vm295, %v539, 0.0
        %v542 = vsel %vm295, %v540, 0.0
        %v543 = vadd.f32 %v541, %v542
        %544 = vadd.xlane.f32.xlu0 %v543
        %v545 = vpop.xlane.xlu0 %544
        %546 = vst.msk [vmem:[#allocation2] sm:$0xf] %vm373, %v545
        %s547 = sadd.s32 %s459, 5
        %s548 = sld [smem:[#allocation4 + %s547]]
        %v549 = vstv %s548
        %vm550 = vcmp.eq.s32.totalorder %v275, %v549
        %vm551 = vcmp.eq.s32.totalorder %v276, %v549
        %v552 = vsel %vm550, 1, 0
        %v553 = vsel %vm551, 1, 0
        %vm554 = vcmp.eq.s32.totalorder %v552, 1
        %vm555 = vcmp.eq.s32.totalorder %v553, 1
        %v556 = vsel %vm554, %v453, 0.0
        %v557 = vsel %vm555, %v469, 0.0
        %v558 = vsel %vm295, %v556, 0.0
        %v559 = vsel %vm295, %v557, 0.0
        %v560 = vadd.f32 %v558, %v559
        %561 = vadd.xlane.f32.xlu0 %v560
        %v562 = vpop.xlane.xlu0 %561
        %563 = vst.msk [vmem:[#allocation2] sm:$0xf] %vm391, %v562
        %s564 = sadd.s32 %s459, 6
        %s565 = sld [smem:[#allocation4 + %s564]]
        %v566 = vstv %s565
        %vm567 = vcmp.eq.s32.totalorder %v275, %v566
        %vm568 = vcmp.eq.s32.totalorder %v276, %v566
        %v569 = vsel %vm567, 1, 0
        %v570 = vsel %vm568, 1, 0
        %vm571 = vcmp.eq.s32.totalorder %v569, 1
        %vm572 = vcmp.eq.s32.totalorder %v570, 1
        %v573 = vsel %vm571, %v453, 0.0
        %v574 = vsel %vm572, %v469, 0.0
        %v575 = vsel %vm295, %v573, 0.0
        %v576 = vsel %vm295, %v574, 0.0
        %v577 = vadd.f32 %v575, %v576
        %578 = vadd.xlane.f32.xlu0 %v577
        %v579 = vpop.xlane.xlu0 %578
        %580 = vst.msk [vmem:[#allocation2] sm:$0xf] %vm409, %v579
        %s581 = sadd.s32 %s459, 7
        %s582 = sld [smem:[#allocation4 + %s581]]
        %v583 = vstv %s582
        %vm584 = vcmp.eq.s32.totalorder %v275, %v583
        %vm585 = vcmp.eq.s32.totalorder %v276, %v583
        %v586 = vsel %vm584, 1, 0
        %v587 = vsel %vm585, 1, 0
        %vm588 = vcmp.eq.s32.totalorder %v586, 1
        %vm589 = vcmp.eq.s32.totalorder %v587, 1
        %v590 = vsel %vm588, %v453, 0.0
        %v591 = vsel %vm589, %v469, 0.0
        %v592 = vsel %vm295, %v590, 0.0
        %v593 = vsel %vm295, %v591, 0.0
        %v594 = vadd.f32 %v592, %v593
        %595 = vadd.xlane.f32.xlu0 %v594
        %v596 = vpop.xlane.xlu0 %595
        %597 = vst.msk [vmem:[#allocation2] sm:$0xf] %vm427, %v596
        %v598 = vld [vmem:[#allocation2] sm:$0xf]
        %v600 = vlaneseq
        %v601 = vshrl.u32 %v600, 7
        %v602 = vsub.s32 0, %v601
        %v603 = vrot.slane %v457, %v602
        %v605 = vmul.f32 %v598, %v603
        %v606 = vmul.f32 %v455, %v603
        %v607 = vsub.f32 %v605, %v606
        %v608 = vand.u32 2147483647, %v607
        %v609 = vsel %vm440, %v608, 0.0
        %610 = vadd.xlane.f32.xlu0 %v609
        %v611 = vpop.xlane.xlu0 %610
        %v612 = vrot.slane %v611, 4
        %v613 = vadd.f32 %v611, %v612
        %v614 = vrot.slane %v613, 2
        %v615 = vadd.f32 %v613, %v614
        %v616 = vrot.slane %v615, 1
        %v617 = vadd.f32 %v615, %v616
        %s618 = vtos %v617
        %s619 = sadd.f32 %s451, %s618
        %v620 = vstv %s619
        %621 = vst [vmem:[%s270] sm:$0x1] %v620
        %s622 = sand.u32 %s114, 1
        %s623 = scalar_lea.sflag [#allocation7], %s622
        %s624 = sand.u32 %s114, 1
        %s625 = scalar_lea.vmem [#allocation11], %s624
        // Predicated region
        $region45: #{l1_loss.1} parent=31 // pred_check
          %p626 = pneg %p124
        $region46: #{l1_loss.1} parent=31 // pred_check_branch
          %628 = sbr.rel (%p626) target = $region48
        $region47: #{l1_loss.1} parent=31 // pred_region
          %s630 = ssub.s32 16, 16
          %631 = vsyncadd %s623, %s630
          %s632 = smul.addr %s28, 16
          %s633 = scalar_lea.hbm %s4, %s632
          %s635 = sshll.u32 %s625, 4
          %s636 = int_to_ptr.vmem [resolvable:$true] %s635
          %638 = dma.vmem_to_hbm [thread:$0]  %s636, 16, %s633, %s623
        $region48: #{l1_loss.1} parent=31 // pred_fallthru
          _
      $region32: #{l1_loss.1} parent=5 // pred_fallthru
        _
      %p639 = scmp.le.s32.totalorder 2, %s23
      // Predicated region
      $region49: #{l1_loss.1} parent=5 // pred_check
        %p640 = pneg %p639
      $region50: #{l1_loss.1} parent=5 // pred_check_branch
        %642 = sbr.rel (%p640) target = $region52
      $region51: #{l1_loss.1} parent=5 // pred_region
        %s643 = ssub.s32 %s23, 2
        // Predicated region
        $region53: #{l1_loss.1} parent=51 // pred_check
          %p644 = pneg %p130
        $region54: #{l1_loss.1} parent=51 // pred_check_branch
          %646 = sbr.rel (%p644) target = $region56
        $region55: #{l1_loss.1} parent=51 // pred_region
          %s647 = sand.u32 %s115, 1
          %s648 = scalar_lea.sflag [#allocation7], %s647
          %s649 = sand.u32 %s115, 1
          %s650 = scalar_lea.vmem [#allocation11], %s649
          %651 = dma.done %s648, 16
        $region56: #{l1_loss.1} parent=51 // pred_fallthru
          _
      $region52: #{l1_loss.1} parent=5 // pred_fallthru
        _
    $region6: #{l1_loss.1} parent=1 // loop_footer
      %s27 = sadd.s32 1, %s23
    $region7: #{l1_loss.1} parent=1 // loop_footer_branch
      %22 = sbr.rel target = $region3
    $region8: #{l1_loss.1} parent=1 // loop_exit
      _
    %652 = vsyncpa [#allocation6], 1
    %s653 = scalar_lea.sflag [#allocation6], 1
    %654 = vsyncpa %s653, 1
    %655 = vsyncpa [#allocation9], 1
    %s656 = scalar_lea.sflag [#allocation9], 1
    %657 = vsyncpa %s656, 1
    %658 = vsyncpa [#allocation7], 1
    %s659 = scalar_lea.sflag [#allocation7], 1
    %660 = vsyncpa %s659, 1

</llo_original>
